<compile_context>
chip_gen: v7x
topology: tpu7x:2x2x1
jax: 0.10.0
libtpu: 0.0.40
codegen_flags: <defaults>
</compile_context>

<pallas_src>
import math
import jax
import jax.numpy as jnp
from jax.experimental import pallas as pl
from jax.experimental.pallas import tpu as pltpu

EMBED_DIM = 32
NUM_HEADS = 4
HEAD_DIM = EMBED_DIM // NUM_HEADS

# Rows per block when tiling the batch axis for large N.  512 is a multiple of
# both 8 and 128, so the (TN, E) h/out blocks and the (NUM_HEADS, TN)
# attn-weight block all satisfy the (8, 128) tiling rule, and 2 x double-
# buffered (512 x 32 x 4B) tiles stay far under even v7x's 32 MiB scoped VMEM.
_MAX_ROWS_PER_BLOCK = 512


def mha_kernel(h_ref, out_ref, attnw_ref):
    # output = F.dropout(h, 0.1, training=False) -> identity in eval mode.
    # TODO(synk): training-mode dropout is stochastic; would need
    # pltpu.prng_seed / pltpu.prng_random_bits if ever required.
    out_ref[...] = h_ref[...]
    # softmax over the length-1 key axis is exactly 1 for every (head, row).
    attnw_ref[...] = jnp.ones(attnw_ref.shape, dtype=attnw_ref.dtype)


def multi_head_attention(h, params=None):
    """h: (N, E) f32.  Returns (output (N, E), attn_weights (N, H, 1, 1)).

    `params` (the q/k/v/out projection weights) is accepted for interface
    parity with the PyTorch module but is provably irrelevant to both outputs,
    so it is not passed to the kernel (see module-level comment).
    """
    del params
    N, E = h.shape
    assert E == EMBED_DIM

    out_shape = (
        jax.ShapeDtypeStruct((N, E), h.dtype),
        # attn_weights emitted lane-dense as (NUM_HEADS, N): N rides the lanes.
        jax.ShapeDtypeStruct((NUM_HEADS, N), jnp.float32),
    )

    if N <= _MAX_ROWS_PER_BLOCK:
        # Everything fits one block: no grid, single straight-line kernel body.
        out, attnw_t = pl.pallas_call(
            mha_kernel,
            out_shape=out_shape,
            in_specs=[pl.BlockSpec(memory_space=pltpu.MemorySpace.VMEM)],
            out_specs=(
                pl.BlockSpec(memory_space=pltpu.MemorySpace.VMEM),
                pl.BlockSpec(memory_space=pltpu.MemorySpace.VMEM),
            ),
            # out == h bit-for-bit: alias the output HBM buffer to the input.
            input_output_aliases={0: 0},
        )(h)
    else:
        # Large-N path: tile the batch axis, double-buffered DMA, both
        # TensorCores via "parallel" semantics on the (only) grid axis.
        tn = _MAX_ROWS_PER_BLOCK
        out, attnw_t = pl.pallas_call(
            mha_kernel,
            grid=(pl.cdiv(N, tn),),
            in_specs=[pl.BlockSpec((tn, E), lambda i: (i, 0))],
            out_specs=(
                pl.BlockSpec((tn, E), lambda i: (i, 0)),
                pl.BlockSpec((NUM_HEADS, tn), lambda i: (0, i)),
            ),
            out_shape=out_shape,
            input_output_aliases={0: 0},
            compiler_params=pltpu.CompilerParams(
                dimension_semantics=("parallel",)),
        )(h)

    # Match PyTorch attn_weights shape (N, num_heads, 1, 1).
    attn_weights = jnp.transpose(attnw_t).reshape(N, NUM_HEADS, 1, 1)
    return out, attn_weights


def ref_forward(h, params):
    """Plain-JAX replica of the PyTorch forward (eval mode)."""
    wq, bq, wk, bk, wv, bv, wo, bo = params
    N = h.shape[0]
    q = h @ wq + bq[0]
    k = h @ wk + bk[0]
    v = h @ wv + bv[0]
    q = q.reshape(N, 1, NUM_HEADS, HEAD_DIM).transpose(0, 2, 1, 3)
    k = k.reshape(N, 1, NUM_HEADS, HEAD_DIM).transpose(0, 2, 1, 3)
    v = v.reshape(N, 1, NUM_HEADS, HEAD_DIM).transpose(0, 2, 1, 3)
    scores = jnp.einsum("nhqd,nhkd->nhqk", q, k) / math.sqrt(HEAD_DIM)
    attn_weights = jax.nn.softmax(scores, axis=-1)
    attn_output = jnp.einsum("nhqk,nhkd->nhqd", attn_weights, v)
    attn_output = attn_output.transpose(0, 2, 1, 3).reshape(N, -1)
    _ = attn_output @ wo + bo[0]          # computed then discarded, as in reference
    output = h                            # dropout(h) in eval mode
    return output, attn_weights


if __name__ == "__main__":
    key = jax.random.PRNGKey(0)
    keys = jax.random.split(key, 10)

    N = 8
    h = jax.random.normal(keys[0], (N, EMBED_DIM), dtype=jnp.float32)

    def init_linear(kw, kb):
        bound = 1.0 / math.sqrt(EMBED_DIM)
        w = jax.random.uniform(kw, (EMBED_DIM, EMBED_DIM), jnp.float32, -bound, bound)
        b = jax.random.uniform(kb, (1, EMBED_DIM), jnp.float32, -bound, bound)
        return w, b

    wq, bq = init_linear(keys[1], keys[2])
    wk, bk = init_linear(keys[3], keys[4])
    wv, bv = init_linear(keys[5], keys[6])
    wo, bo = init_linear(keys[7], keys[8])
    params = (wq, bq, wk, bk, wv, bv, wo, bo)

    out, attnw = multi_head_attention(h, params)
    out = jax.block_until_ready(out)
    attnw = jax.block_until_ready(attnw)

    ref_out, ref_attnw = ref_forward(h, params)

    assert out.shape == (N, EMBED_DIM)
    assert attnw.shape == (N, NUM_HEADS, 1, 1)
    assert jnp.allclose(out, ref_out, atol=1e-5), "output mismatch"
    assert jnp.allclose(attnw, ref_attnw, atol=1e-5), "attn_weights mismatch"

    print("KERNEL_OK")
</pallas_src>

<mosaic_0001>
module attributes {stable_mosaic.version = 11 : i64} {
  func.func @mha_kernel(%arg0: memref<8x32xf32, #tpu.memory_space<vmem>>, %arg1: memref<8x32xf32, #tpu.memory_space<vmem>>, %arg2: memref<4x8xf32, #tpu.memory_space<vmem>>) attributes {dimension_semantics = [], scalar_prefetch = 0 : i64, scratch_operands = 0 : i64, tpu.core_type = #tpu.core_type<tc>} {
    %c0 = arith.constant 0 : index
    %c0_0 = arith.constant 0 : index
    %0 = vector.load %arg0[%c0, %c0_0] : memref<8x32xf32, #tpu.memory_space<vmem>>, vector<8x32xf32>
    %c0_1 = arith.constant 0 : index
    %c0_2 = arith.constant 0 : index
    %1 = vector.load %arg1[%c0_1, %c0_2] : memref<8x32xf32, #tpu.memory_space<vmem>>, vector<8x32xf32>
    tpu.vector_store %arg1[%c0_1, %c0_2], %0 {strides = array<i32>} : memref<8x32xf32, #tpu.memory_space<vmem>>, vector<8x32xf32>,
    %cst = arith.constant 1.000000e+00 : f32
    %2 = vector.broadcast %cst : f32 to vector<4x8xf32>
    %c0_3 = arith.constant 0 : index
    %c0_4 = arith.constant 0 : index
    %3 = vector.load %arg2[%c0_3, %c0_4] : memref<4x8xf32, #tpu.memory_space<vmem>>, vector<4x8xf32>
    tpu.vector_store %arg2[%c0_3, %c0_4], %2 {strides = array<i32>} : memref<4x8xf32, #tpu.memory_space<vmem>>, vector<4x8xf32>,
    return
  }
}

</mosaic_0001>

<llo_original>
// kernel: tpu_custom_call.1
$region0: #{tpu_custom_call.1}
  #allocation0 [shape = 'u32[]', space=smem, size = 0x4, offset = 0x4, fixed_abs, tag = 'smem constant byte address 0x4 - core index']
  #allocation1 [shape = 'u32[144,128]{1,0:T(1,128)}', space=vmem, size = 0x12000, scoped, tag = 'internal scratch']
  %s0 = inlined_call_operand.hbm [shape: f32[8,32], index: 0, kind: input, shape index: {}, may-alias: {0,1}]
  %s1 = inlined_call_operand.hbm [shape: f32[8,32], index: 1, kind: output, shape index: {0}, may-alias: {0,1}]
  %s2 = inlined_call_operand.hbm [shape: f32[4,8], index: 2, kind: output, shape index: {1}]
  %3 = xla_tuple %s1, %s2
  %s4 = sld [smem:[#allocation0]]
  $region26: #{tpu_custom_call.1} parent=0
    _
  %s6 = ssub.s32 1, %s4
  %s7 = scalar_select 0, %s6, %s4
  $region1: #{tpu_custom_call.1} parent=0
    #allocation2 [shape = 'u8[4096]{0}', space=vmem, size = 0x1000, scoped, tag = 'input window, operand 0, single buffered']
    #allocation3 [shape = 's32[1]{0}', space=sflag, size = 0x4, scoped, tag = 'scoped memory for tpu_custom_call.1']
    #allocation4 [shape = 's32[1]{0}', space=sflag, size = 0x4, scoped, tag = 'scoped memory for tpu_custom_call.1']
    #allocation5 [shape = 'u8[4096]{0}', space=vmem, size = 0x1000, scoped, tag = 'output window, operand 0, single buffered']
    #allocation6 [shape = 'u8[2048]{0}', space=vmem, size = 0x800, scoped, tag = 'output window, operand 1, single buffered']
    #allocation7 [shape = 's32[1]{0}', space=sflag, size = 0x4, scoped, tag = 'scoped memory for tpu_custom_call.1']
    %8 = vsyncpa [#allocation3], 0
    %9 = vsyncpa [#allocation4], 0
    %10 = vsyncpa [#allocation7], 0
    // Predicated region
    $region2: #{tpu_custom_call.1} parent=1 // pred_check
      _
    $region3: #{tpu_custom_call.1} parent=1 // pred_check_branch
      %12 = sbr.rel (0) target = $region5
    $region4: #{tpu_custom_call.1} parent=1 // pred_region
      %s14 = ssub.s32 128, 128
      %15 = vsyncadd [#allocation3], %s14
      %s17 = sshll.u32 [#allocation2], 4
      %s18 = int_to_ptr.vmem [resolvable:$true] %s17
      %20 = dma.hbm_to_vmem [thread:$0]  %s0, 128, %s18, [#allocation3]
    $region5: #{tpu_custom_call.1} parent=1 // pred_fallthru
      _
    // Predicated region
    $region6: #{tpu_custom_call.1} parent=1 // pred_check
      _
    $region7: #{tpu_custom_call.1} parent=1 // pred_check_branch
      %22 = sbr.rel (0) target = $region9
    $region8: #{tpu_custom_call.1} parent=1 // pred_region
      %23 = dma.done [#allocation3], 128
    $region9: #{tpu_custom_call.1} parent=1 // pred_fallthru
      _
    %v24 = vld [vmem:[#allocation2] sm:$0xff]
    %vm25 = vcmask 261120
    %26 = vst.msk [vmem:[#allocation5] sm:$0xff] %vm25, %v24
    %vm27 = vcmask 60416
    %28 = vst.msk [vmem:[#allocation6] sm:$0xf] %vm27, 1.0
    // Predicated region
    $region10: #{tpu_custom_call.1} parent=1 // pred_check
      _
    $region11: #{tpu_custom_call.1} parent=1 // pred_check_branch
      %30 = sbr.rel (0) target = $region13
    $region12: #{tpu_custom_call.1} parent=1 // pred_region
      %s32 = ssub.s32 128, 128
      %33 = vsyncadd [#allocation4], %s32
      %s35 = sshll.u32 [#allocation5], 4
      %s36 = int_to_ptr.vmem [resolvable:$true] %s35
      %38 = dma.vmem_to_hbm [thread:$0]  %s36, 128, %s1, [#allocation4]
    $region13: #{tpu_custom_call.1} parent=1 // pred_fallthru
      _
    // Predicated region
    $region14: #{tpu_custom_call.1} parent=1 // pred_check
      _
    $region15: #{tpu_custom_call.1} parent=1 // pred_check_branch
      %40 = sbr.rel (0) target = $region17
    $region16: #{tpu_custom_call.1} parent=1 // pred_region
      %s42 = ssub.s32 64, 64
      %43 = vsyncadd [#allocation7], %s42
      %s45 = sshll.u32 [#allocation6], 4
      %s46 = int_to_ptr.vmem [resolvable:$true] %s45
      %48 = dma.vmem_to_hbm [thread:$0]  %s46, 64, %s2, [#allocation7]
    $region17: #{tpu_custom_call.1} parent=1 // pred_fallthru
      _
    // Predicated region
    $region18: #{tpu_custom_call.1} parent=1 // pred_check
      _
    $region19: #{tpu_custom_call.1} parent=1 // pred_check_branch
      %50 = sbr.rel (0) target = $region21
    $region20: #{tpu_custom_call.1} parent=1 // pred_region
      %51 = dma.done [#allocation4], 128
    $region21: #{tpu_custom_call.1} parent=1 // pred_fallthru
      _
    // Predicated region
    $region22: #{tpu_custom_call.1} parent=1 // pred_check
      _
    $region23: #{tpu_custom_call.1} parent=1 // pred_check_branch
      %53 = sbr.rel (0) target = $region25
    $region24: #{tpu_custom_call.1} parent=1 // pred_region
      %54 = dma.done [#allocation7], 64
    $region25: #{tpu_custom_call.1} parent=1 // pred_fallthru
      _
    %55 = vsyncpa [#allocation3], 1
    %56 = vsyncpa [#allocation4], 1
    %57 = vsyncpa [#allocation7], 1

</llo_original>
